<compile_context>
chip_gen: v7x
topology: tpu7x:2x2x1
jax: 0.10.0
libtpu: 0.0.40
codegen_flags: <defaults>
</compile_context>

<pallas_src>
import jax
import jax.numpy as jnp
from jax.experimental import pallas as pl
from jax.experimental.pallas import tpu as pltpu


def tat_kernel(x_ref, w_ref, be_ref, ve_ref, o_ref):
    """One grid step = BB batch elements.

    x_ref  : (BB*T, N*F)  rows = (batch, time), lanes = (vertex, feature)
    w_ref  : (N*F, 2*N)   [:, :N] = U1[n]*U2[f,n'],  [:, N:] = kron(I_N, U3)
    be_ref : (T, T)
    ve_ref : (T, T)
    o_ref  : (BB, T, T)   softmax(E) for this batch block (final layout)
    """
    bb, t, _ = o_ref.shape
    n = w_ref.shape[1] // 2

    # Single fused pass over x on the MXU.  Columns [:N] are the `lhs` rows,
    # columns [N:] are the `rhs^T` rows.
    y = jnp.dot(x_ref[...], w_ref[...],
                preferred_element_type=jnp.float32)          # (BB*T, 2N)

    lhs = y[:, :n].reshape(bb, t, n)       # lhs[b, t1, n']
    rhs_t = y[:, n:].reshape(bb, t, n)     # rhs[b, n, t2] transposed -> [b, t2, n]

    # product[b, t1, t2] = sum_n lhs[b, t1, n] * rhs[b, n, t2]   (batched MXU)
    prod = jax.lax.dot_general(
        lhs, rhs_t, (((2,), (2,)), ((0,), (0,))),
        preferred_element_type=jnp.float32)                  # (BB, T, T)

    # One vectorized sigmoid over the whole batch block (be broadcast over b).
    s = jax.nn.sigmoid(prod + be_ref[...])                   # (BB, T, T)

    # E[b] = Ve @ S[b]; Ve is shared, broadcast once (hoisted out of any loop).
    ve_b = jnp.broadcast_to(ve_ref[...], (bb, t, t))
    e = jax.lax.dot_general(
        ve_b, s, (((2,), (1,)), ((0,), (0,))),
        preferred_element_type=jnp.float32)                  # (BB, T, T)

    # softmax over dim=1 of the (B, T, T) result, vectorized over the whole
    # block; exact division (no approximate reciprocal).
    e_max = jnp.max(e, axis=1, keepdims=True)
    ex = jnp.exp(e - e_max)
    denom = jnp.sum(ex, axis=1, keepdims=True)
    o_ref[...] = ex / denom


def _num_tensorcores():
    """Best-effort TensorCores-per-chip (v5e/v6e: 1, v7x: 2); defaults to 1."""
    try:
        info = pltpu.get_tpu_info()
        for attr in ("num_cores", "core_count", "num_tensorcores"):
            v = getattr(info, attr, None)
            if isinstance(v, int) and v > 0:
                return v
    except Exception:
        pass
    return 1


def _pick_batch_block(batch, num_tensorcores):
    """Batch elements per grid step (always a divisor of `batch`).

    * Large blocks amortize the ~0.35us per-grid-step pipeline overhead, so on
      single-TensorCore chips (v5e/v6e) the largest feasible block is used.
    * The cap (256) bounds the lane-padded (T < 128 lanes) per-batch
      intermediates (~32 KiB/batch) to ~8 MiB, far below the 32 MiB scoped
      VMEM budget on every generation (v7x physical VMEM is 64 MiB).
    * Only when >1 TensorCore is detected (v7x) do we keep >= num_tensorcores
      grid blocks, and only once each block still holds a non-trivial amount
      of work; the "parallel" grid axis is then sharded across the cores.
    """
    cap = 256
    divisors = [d for d in range(1, batch + 1) if batch % d == 0]
    candidates = [d for d in divisors if d <= cap] or [1]
    if num_tensorcores > 1 and batch >= 2 * num_tensorcores:
        split = [d for d in candidates if d <= batch // num_tensorcores]
        if split and max(split) >= 16:     # ~a few microseconds of work/block
            candidates = split
    return max(candidates)


def tat_forward(x, u1, u2, u3, be, ve):
    """x: (B, N, F, T); u1: (N,); u2: (F, N); u3: (F,); be: (1, T, T); ve: (T, T)."""
    B, N, F, T = x.shape
    NF = N * F
    f32 = jnp.float32
    x, u1, u2, u3, be, ve = (a.astype(f32) for a in (x, u1, u2, u3, be, ve))

    BB = _pick_batch_block(B, _num_tensorcores())   # batches per grid block
    NB = B // BB                                    # number of grid blocks

    # Fold U1/U2 and U3 into ONE fused (N*F, 2N) weight so the whole
    # x-contraction runs as a single MXU matmul per block:
    #   W[:, :N][n*F+f, n'] = U1[n] * U2[f, n']      -> lhs rows
    #   W[:, N:][n*F+f, n'] = (n == n') * U3[f]      -> rhs^T rows
    w1 = (u1[:, None, None] * u2[None, :, :]).reshape(NF, N)
    w3t = jnp.kron(jnp.eye(N, dtype=f32), u3.reshape(F, 1))
    w = jnp.concatenate([w1, w3t], axis=1)                      # (NF, 2N)

    # Lane-dense x: rows = (batch, time), lanes = (vertex, feature).
    xr = jnp.transpose(x, (0, 3, 1, 2)).reshape(B * T, NF)

    flops = 2 * B * T * NF * (2 * N) + 2 * B * T * T * N + 2 * B * T * T * T
    bytes_accessed = 4 * (B * T * NF + NF * 2 * N + 2 * T * T + B * T * T)
    cost = pl.CostEstimate(flops=flops,
                           transcendentals=2 * B * T * T,
                           bytes_accessed=bytes_accessed)

    return pl.pallas_call(
        tat_kernel,
        out_shape=jax.ShapeDtypeStruct((B, T, T), f32),
        grid=(NB,),
        in_specs=[
            pl.BlockSpec((BB * T, NF), lambda i: (i, 0)),   # x rows of block i
            pl.BlockSpec((NF, 2 * N), lambda i: (0, 0)),    # fused weight
            pl.BlockSpec((T, T), lambda i: (0, 0)),         # be
            pl.BlockSpec((T, T), lambda i: (0, 0)),         # Ve
        ],
        out_specs=pl.BlockSpec((BB, T, T), lambda i: (i, 0, 0)),
        compiler_params=pltpu.CompilerParams(
            dimension_semantics=("parallel",),
            vmem_limit_bytes=32 * 1024 * 1024,
        ),
        cost_estimate=cost,
    )(xr, w, be[0], ve)


def tat_reference(x, u1, u2, u3, be, ve):
    """Pure-JAX replica of the PyTorch forward pass (for verification)."""
    inner = jnp.matmul(jnp.transpose(x, (0, 3, 2, 1)), u1)   # (B, T, F)
    lhs = jnp.matmul(inner, u2)                              # (B, T, N)
    rhs = jnp.einsum('f,bnft->bnt', u3, x)                   # (B, N, T)
    product = jnp.matmul(lhs, rhs)                           # (B, T, T)
    e = jnp.matmul(ve, jax.nn.sigmoid(product + be))         # (B, T, T)
    return jax.nn.softmax(e, axis=1)


if __name__ == "__main__":
    # Small, module-consistent shapes: inputs=4 features, vertices=16, timesteps=8.
    B, N, F, T = 2, 16, 4, 8
    key = jax.random.PRNGKey(0)
    ks = jax.random.split(key, 6)

    x = jax.random.normal(ks[0], (B, N, F, T), dtype=jnp.float32)
    # Deterministic parameter init (module's __init__ leaves them uninitialized).
    u1 = 0.1 * jax.random.normal(ks[1], (N,), dtype=jnp.float32)
    u2 = 0.1 * jax.random.normal(ks[2], (F, N), dtype=jnp.float32)
    u3 = 0.1 * jax.random.normal(ks[3], (F,), dtype=jnp.float32)
    be = 0.1 * jax.random.normal(ks[4], (1, T, T), dtype=jnp.float32)
    ve = 0.1 * jax.random.normal(ks[5], (T, T), dtype=jnp.float32)

    fwd = jax.jit(tat_forward)
    out = jax.block_until_ready(fwd(x, u1, u2, u3, be, ve))

    ref = tat_reference(x, u1, u2, u3, be, ve)
    assert out.shape == (B, T, T), out.shape
    # Tolerance headroom is for MXU f32-via-bf16-pass matmuls (kernel and XLA
    # reference both use default matmul precision) and fp32 vs. the module's
    # conceptual float64 — the softmax itself now uses exact division.
    assert jnp.allclose(out, ref, rtol=2e-3, atol=2e-3), \
        float(jnp.max(jnp.abs(out - ref)))

    print("KERNEL_OK")
</pallas_src>

<mosaic_0001>
module attributes {stable_mosaic.version = 11 : i64} {
  func.func @tat_kernel(%arg0: i32, %arg1: memref<16x64xf32, #tpu.memory_space<vmem>>, %arg2: memref<64x32xf32, #tpu.memory_space<vmem>>, %arg3: memref<8x8xf32, #tpu.memory_space<vmem>>, %arg4: memref<8x8xf32, #tpu.memory_space<vmem>>, %arg5: memref<2x8x8xf32, #tpu.memory_space<vmem>>) attributes {dimension_semantics = [#tpu.dimension_semantics<parallel>], iteration_bounds = array<i64: 1>, scalar_prefetch = 0 : i64, scratch_operands = 0 : i64, tpu.core_type = #tpu.core_type<tc>, window_params = [{transform_indices = @transform_0, window_bounds = array<i64: 16, 64>}, {pipeline_mode = #tpu.pipeline_mode<synchronous>, transform_indices = @transform_1, window_bounds = array<i64: 64, 32>}, {pipeline_mode = #tpu.pipeline_mode<synchronous>, transform_indices = @transform_2, window_bounds = array<i64: 8, 8>}, {pipeline_mode = #tpu.pipeline_mode<synchronous>, transform_indices = @transform_3, window_bounds = array<i64: 8, 8>}, {transform_indices = @transform_4, window_bounds = array<i64: 2, 8, 8>}]} {
    %c0 = arith.constant 0 : index
    %c0_0 = arith.constant 0 : index
    %0 = vector.load %arg1[%c0, %c0_0] : memref<16x64xf32, #tpu.memory_space<vmem>>, vector<16x64xf32>
    %c0_1 = arith.constant 0 : index
    %c0_2 = arith.constant 0 : index
    %1 = vector.load %arg2[%c0_1, %c0_2] : memref<64x32xf32, #tpu.memory_space<vmem>>, vector<64x32xf32>
    %cst = arith.constant dense<0.000000e+00> : vector<16x32xf32>
    %2 = tpu.matmul %0, %1, %cst {dimension_numbers = #tpu.dot_dimension_numbers<[1], [0], [0], [1], [0, 0, 1, 1], [], []>} : vector<16x64xf32>, vector<64x32xf32>, vector<16x32xf32> -> vector<16x32xf32>
    %3 = vector.extract_strided_slice %2 {offsets = [0, 0], sizes = [16, 16], strides = [1, 1]} : vector<16x32xf32> to vector<16x16xf32>
    %4 = vector.shape_cast %3 : vector<16x16xf32> to vector<2x8x16xf32>
    %5 = vector.extract_strided_slice %2 {offsets = [0, 16], sizes = [16, 16], strides = [1, 1]} : vector<16x32xf32> to vector<16x16xf32>
    %6 = vector.shape_cast %5 : vector<16x16xf32> to vector<2x8x16xf32>
    %cst_3 = arith.constant dense<0.000000e+00> : vector<2x8x8xf32>
    %7 = tpu.matmul %4, %6, %cst_3 {dimension_numbers = #tpu.dot_dimension_numbers<[2], [2], [1], [1], [0, 0, 0, 1, 1, 1], [0], [0]>} : vector<2x8x16xf32>, vector<2x8x16xf32>, vector<2x8x8xf32> -> vector<2x8x8xf32>
    %c0_4 = arith.constant 0 : index
    %c0_5 = arith.constant 0 : index
    %8 = vector.load %arg3[%c0_4, %c0_5] : memref<8x8xf32, #tpu.memory_space<vmem>>, vector<8x8xf32>
    %9 = vector.shape_cast %8 : vector<8x8xf32> to vector<1x8x8xf32>
    %10 = vector.broadcast %9 : vector<1x8x8xf32> to vector<2x8x8xf32>
    %11 = arith.addf %7, %10 : vector<2x8x8xf32>
    %12 = arith.negf %11 : vector<2x8x8xf32>
    %13 = math.exp %12 : vector<2x8x8xf32>
    %cst_6 = arith.constant 1.000000e+00 : f32
    %14 = vector.broadcast %cst_6 : f32 to vector<2x8x8xf32>
    %15 = arith.addf %14, %13 : vector<2x8x8xf32>
    %16 = arith.divf %14, %15 : vector<2x8x8xf32>
    %c0_7 = arith.constant 0 : index
    %c0_8 = arith.constant 0 : index
    %17 = vector.load %arg4[%c0_7, %c0_8] : memref<8x8xf32, #tpu.memory_space<vmem>>, vector<8x8xf32>
    %18 = vector.shape_cast %17 : vector<8x8xf32> to vector<1x8x8xf32>
    %19 = vector.broadcast %18 : vector<1x8x8xf32> to vector<2x8x8xf32>
    %cst_9 = arith.constant dense<0.000000e+00> : vector<2x8x8xf32>
    %20 = tpu.matmul %19, %16, %cst_9 {dimension_numbers = #tpu.dot_dimension_numbers<[2], [1], [1], [2], [0, 0, 0, 1, 1, 2], [0], [0]>} : vector<2x8x8xf32>, vector<2x8x8xf32>, vector<2x8x8xf32> -> vector<2x8x8xf32>
    %cst_10 = arith.constant dense<0xFF800000> : vector<2x8xf32>
    %21 = vector.multi_reduction <maximumf>, %20, %cst_10 [1] : vector<2x8x8xf32> to vector<2x8xf32>
    %22 = vector.shape_cast %21 : vector<2x8xf32> to vector<2x1x8xf32>
    %23 = vector.broadcast %22 : vector<2x1x8xf32> to vector<2x8x8xf32>
    %24 = arith.subf %20, %23 : vector<2x8x8xf32>
    %25 = math.exp %24 : vector<2x8x8xf32>
    %cst_11 = arith.constant dense<0.000000e+00> : vector<2x8xf32>
    %26 = vector.multi_reduction <add>, %25, %cst_11 [1] : vector<2x8x8xf32> to vector<2x8xf32>
    %27 = vector.shape_cast %26 : vector<2x8xf32> to vector<2x1x8xf32>
    %28 = vector.broadcast %27 : vector<2x1x8xf32> to vector<2x8x8xf32>
    %29 = arith.divf %25, %28 : vector<2x8x8xf32>
    %c0_12 = arith.constant 0 : index
    %c0_13 = arith.constant 0 : index
    %c0_14 = arith.constant 0 : index
    %30 = vector.load %arg5[%c0_12, %c0_13, %c0_14] : memref<2x8x8xf32, #tpu.memory_space<vmem>>, vector<2x8x8xf32>
    tpu.vector_store %arg5[%c0_12, %c0_13, %c0_14], %29 {strides = array<i32>} : memref<2x8x8xf32, #tpu.memory_space<vmem>>, vector<2x8x8xf32>,
    return
  }
  func.func @transform_0(%arg0: i32) -> (i32, i32) {
    %c0_i32 = arith.constant 0 : i32
    %c0_i32_0 = arith.constant 0 : i32
    return %arg0, %c0_i32 : i32, i32
  }
  func.func @transform_1(%arg0: i32) -> (i32, i32) {
    %c0_i32 = arith.constant 0 : i32
    %c0_i32_0 = arith.constant 0 : i32
    %c0_i32_1 = arith.constant 0 : i32
    return %c0_i32, %c0_i32_0 : i32, i32
  }
  func.func @transform_2(%arg0: i32) -> (i32, i32) {
    %c0_i32 = arith.constant 0 : i32
    %c0_i32_0 = arith.constant 0 : i32
    %c0_i32_1 = arith.constant 0 : i32
    return %c0_i32, %c0_i32_0 : i32, i32
  }
  func.func @transform_3(%arg0: i32) -> (i32, i32) {
    %c0_i32 = arith.constant 0 : i32
    %c0_i32_0 = arith.constant 0 : i32
    %c0_i32_1 = arith.constant 0 : i32
    return %c0_i32, %c0_i32_0 : i32, i32
  }
  func.func @transform_4(%arg0: i32) -> (i32, i32, i32) {
    %c0_i32 = arith.constant 0 : i32
    %c0_i32_0 = arith.constant 0 : i32
    %c0_i32_1 = arith.constant 0 : i32
    return %arg0, %c0_i32, %c0_i32_0 : i32, i32, i32
  }
}

</mosaic_0001>

<llo_original>
// kernel: tat_forward.1
$region0: #{tat_forward.1}
  #allocation0 [shape = 'u32[]', space=smem, size = 0x4, offset = 0x4, fixed_abs, tag = 'smem constant byte address 0x4 - core index']
  #allocation1 [shape = 'u32[144,128]{1,0:T(1,128)}', space=vmem, size = 0x12000, scoped, tag = 'internal scratch']
  %s0 = inlined_call_operand.vmem [shape: f32[16,64], index: 0, kind: input, shape index: {}]
  %s1 = inlined_call_operand.vmem [shape: f32[64,32], index: 1, kind: input, shape index: {}]
  %s2 = inlined_call_operand.vmem [shape: f32[8,8], index: 2, kind: input, shape index: {}]
  %s3 = inlined_call_operand.vmem [shape: f32[8,8], index: 3, kind: input, shape index: {}]
  %s4 = inlined_call_operand.hbm [shape: f32[2,8,8], index: 4, kind: output, shape index: {}]
  %s5 = sld [smem:[#allocation0]]
  $region26: #{tat_forward.1} parent=0
    _
  %s7 = ssub.s32 1, %s5
  %s8 = scalar_select 0, %s7, %s5
  $region1: #{tat_forward.1} parent=0
    #allocation2 [shape = 'u8[8192]{0}', space=vmem, size = 0x2000, scoped, tag = 'output window, operand 0, single buffered']
    #allocation3 [shape = 's32[1]{0}', space=sflag, size = 0x4, scoped, tag = 'scoped memory for tat_forward.1']
    %9 = vsyncpa [#allocation3], 0
    // Predicated region
    $region2: #{tat_forward.1} parent=1 // pred_check
      _
    $region3: #{tat_forward.1} parent=1 // pred_check_branch
      %11 = sbr.rel (0) target = $region5
    $region4: #{tat_forward.1} parent=1 // pred_region
      _
    $region5: #{tat_forward.1} parent=1 // pred_fallthru
      _
    // Predicated region
    $region6: #{tat_forward.1} parent=1 // pred_check
      _
    $region7: #{tat_forward.1} parent=1 // pred_check_branch
      %13 = sbr.rel (0) target = $region9
    $region8: #{tat_forward.1} parent=1 // pred_region
      _
    $region9: #{tat_forward.1} parent=1 // pred_fallthru
      _
    // Predicated region
    $region10: #{tat_forward.1} parent=1 // pred_check
      _
    $region11: #{tat_forward.1} parent=1 // pred_check_branch
      %15 = sbr.rel (0) target = $region13
    $region12: #{tat_forward.1} parent=1 // pred_region
      _
    $region13: #{tat_forward.1} parent=1 // pred_fallthru
      _
    // Predicated region
    $region14: #{tat_forward.1} parent=1 // pred_check
      _
    $region15: #{tat_forward.1} parent=1 // pred_check_branch
      %17 = sbr.rel (0) target = $region17
    $region16: #{tat_forward.1} parent=1 // pred_region
      _
    $region17: #{tat_forward.1} parent=1 // pred_fallthru
      _
    %v18 = vld [vmem:[%s0] sm:$0xff]
    %v19 = vld [vmem:[%s0 + $0x8] sm:$0xff]
    %v20 = vld [vmem:[%s1] sm:$0xff]
    %v21 = vld [vmem:[%s1 + $0x8] sm:$0xff]
    %v22 = vld [vmem:[%s1 + $0x10] sm:$0xff]
    %v23 = vld [vmem:[%s1 + $0x18] sm:$0xff]
    %v24 = vld [vmem:[%s1 + $0x20] sm:$0xff]
    %v25 = vld [vmem:[%s1 + $0x28] sm:$0xff]
    %v26 = vld [vmem:[%s1 + $0x30] sm:$0xff]
    %v27 = vld [vmem:[%s1 + $0x38] sm:$0xff]
    %vm28 = vcmask 523264
    %v30 = vsel %vm28, %v18, 0
    %v33 = vsel %vm28, %v19, 0
    %35 = vmatprep.subr.mxu0 0.0
    %36 = vmatpush1.msra.mxu0 %v20
    %37 = vmatprep.subr.mxu0 0.0
    %38 = vmatpush1.msra.mxu0 %v21
    %39 = vmatprep.subr.mxu0 0.0
    %40 = vmatpush1.msra.mxu0 %v22
    %41 = vmatprep.subr.mxu0 0.0
    %42 = vmatpush1.msra.mxu0 %v23
    %43 = vmatprep.subr.mxu0 0.0
    %44 = vmatpush1.msra.mxu0 %v24
    %45 = vmatprep.subr.mxu0 0.0
    %46 = vmatpush1.msra.mxu0 %v25
    %47 = vmatprep.subr.mxu0 0.0
    %48 = vmatpush1.msra.mxu0 %v26
    %49 = vmatprep.subr.mxu0 0.0
    %50 = vmatpush1.msra.mxu0 %v27
    %51 = vmatprep.subr.mxu0 0.0
    %52 = vmatpush1.msra.mxu0 0.0
    %53 = vmatprep.subr.mxu0 0.0
    %54 = vmatpush1.msra.mxu0 0.0
    %55 = vmatprep.subr.mxu0 0.0
    %56 = vmatpush1.msra.mxu0 0.0
    %57 = vmatprep.subr.mxu0 0.0
    %58 = vmatpush1.msra.mxu0 0.0
    %59 = vmatprep.subr.mxu0 0.0
    %60 = vmatpush1.msra.mxu0 0.0
    %61 = vmatprep.subr.mxu0 0.0
    %62 = vmatpush1.msra.mxu0 0.0
    %63 = vmatprep.subr.mxu0 0.0
    %64 = vmatpush1.msra.mxu0 0.0
    %65 = vmatprep.subr.mxu0 0.0
    %66 = vmatpush1.msra.mxu0 0.0
    %67 = vmatprep.subr.mxu0 0.0
    %68 = vmatpush1.msra.mxu0 0.0
    %69 = vmatprep.subr.mxu0 0.0
    %70 = vmatpush1.msra.mxu0 0.0
    %71 = vmatprep.subr.mxu0 0.0
    %72 = vmatpush1.msra.mxu0 0.0
    %73 = vmatprep.subr.mxu0 0.0
    %74 = vmatpush1.msra.mxu0 0.0
    %75 = vmatprep.subr.mxu0 0.0
    %76 = vmatpush1.msra.mxu0 0.0
    %77 = vmatprep.subr.mxu0 0.0
    %78 = vmatpush1.msra.mxu0 0.0
    %79 = vmatprep.subr.mxu0 0.0
    %80 = vmatpush1.msra.mxu0 0.0
    %81 = vmatprep.subr.mxu0 0.0
    %82 = vmatpush1.msra.mxu0 0.0
    %83 = vmatprep.subr.mxu0 0.0
    %84 = vmatpush1.msra.mxu0 0.0
    %85 = vmatprep.subr.mxu0 0.0
    %86 = vmatpush1.msra.mxu0 0.0
    %87 = vmatprep.subr.mxu0 0.0
    %88 = vmatpush1.msra.mxu0 0.0
    %89 = vmatprep.subr.mxu0 0.0
    %90 = vmatpush1.msra.mxu0 0.0
    %91 = vmatprep.subr.mxu0 0.0
    %92 = vmatpush1.msra.mxu0 0.0
    %93 = vmatprep.subr.mxu0 0.0
    %94 = vmatpush1.msra.mxu0 0.0
    %95 = vmatprep.subr.mxu0 0.0
    %96 = vmatpush1.msra.mxu0 0.0
    %97 = vmatprep.subr.mxu0 0.0
    %98 = vmatpush1.msra.mxu0 0.0
    %99 = vmatprep.mubr.f32.mxu0 0.0
    %100 = vmatmul.mubr.f32.gmra.mrb[0].mxu0 %v30
    %v101 = vpop.f32.mrb[0].mxu0
    %v102 = vadd.f32 0.0, %v101
    %v103 = vpop.f32.mrb[0].mxu0
    %104 = vmatprep.mubr.f32.mxu0 0.0
    %105 = vmatmul.mubr.f32.gmra.mrb[0].mxu0 %v33
    %v106 = vpop.f32.mrb[0].mxu0
    %v107 = vadd.f32 0.0, %v106
    %v108 = vpop.f32.mrb[0].mxu0
    %109 = vdwg.mxu0
    %v110 = vld [vmem:[%s2] sm:$0xff]
    %112 = vrot.lane.b32.xlu0 %v102, 112
    %v113 = vpop.permute.xlu0 %112
    %vm114 = vcmask 130048
    %v115 = vsel %vm114, %v102, 0
    %v117 = vsel %vm114, %v113, 0
    %119 = vmatprep.subr.mxu0 0.0
    %120 = vmatpush1.xpose.msra.mxu0 %v117
    %121 = vmatprep.subr.mxu0 0.0
    %122 = vmatpush1.xpose.msra.mxu0 0.0
    %123 = vmatprep.subr.mxu0 0.0
    %124 = vmatpush1.xpose.msra.mxu0 0.0
    %125 = vmatprep.subr.mxu0 0.0
    %126 = vmatpush1.xpose.msra.mxu0 0.0
    %127 = vmatprep.subr.mxu0 0.0
    %128 = vmatpush1.xpose.msra.mxu0 0.0
    %129 = vmatprep.subr.mxu0 0.0
    %130 = vmatpush1.xpose.msra.mxu0 0.0
    %131 = vmatprep.subr.mxu0 0.0
    %132 = vmatpush1.xpose.msra.mxu0 0.0
    %133 = vmatprep.subr.mxu0 0.0
    %134 = vmatpush1.xpose.msra.mxu0 0.0
    %135 = vmatprep.subr.mxu0 0.0
    %136 = vmatpush1.xpose.msra.mxu0 0.0
    %137 = vmatprep.subr.mxu0 0.0
    %138 = vmatpush1.xpose.msra.mxu0 0.0
    %139 = vmatprep.subr.mxu0 0.0
    %140 = vmatpush1.xpose.msra.mxu0 0.0
    %141 = vmatprep.subr.mxu0 0.0
    %142 = vmatpush1.xpose.msra.mxu0 0.0
    %143 = vmatprep.subr.mxu0 0.0
    %144 = vmatpush1.xpose.msra.mxu0 0.0
    %145 = vmatprep.subr.mxu0 0.0
    %146 = vmatpush1.xpose.msra.mxu0 0.0
    %147 = vmatprep.subr.mxu0 0.0
    %148 = vmatpush1.xpose.msra.mxu0 0.0
    %149 = vmatprep.subr.mxu0 0.0
    %150 = vmatpush1.xpose.msra.mxu0 0.0
    %151 = vmatprep.subr.mxu0 0.0
    %152 = vmatpush1.xpose.msra.mxu0 0.0
    %153 = vmatprep.subr.mxu0 0.0
    %154 = vmatpush1.xpose.msra.mxu0 0.0
    %155 = vmatprep.subr.mxu0 0.0
    %156 = vmatpush1.xpose.msra.mxu0 0.0
    %157 = vmatprep.subr.mxu0 0.0
    %158 = vmatpush1.xpose.msra.mxu0 0.0
    %159 = vmatprep.subr.mxu0 0.0
    %160 = vmatpush1.xpose.msra.mxu0 0.0
    %161 = vmatprep.subr.mxu0 0.0
    %162 = vmatpush1.xpose.msra.mxu0 0.0
    %163 = vmatprep.subr.mxu0 0.0
    %164 = vmatpush1.xpose.msra.mxu0 0.0
    %165 = vmatprep.subr.mxu0 0.0
    %166 = vmatpush1.xpose.msra.mxu0 0.0
    %167 = vmatprep.subr.mxu0 0.0
    %168 = vmatpush1.xpose.msra.mxu0 0.0
    %169 = vmatprep.subr.mxu0 0.0
    %170 = vmatpush1.xpose.msra.mxu0 0.0
    %171 = vmatprep.subr.mxu0 0.0
    %172 = vmatpush1.xpose.msra.mxu0 0.0
    %173 = vmatprep.subr.mxu0 0.0
    %174 = vmatpush1.xpose.msra.mxu0 0.0
    %175 = vmatprep.subr.mxu0 0.0
    %176 = vmatpush1.xpose.msra.mxu0 0.0
    %177 = vmatprep.subr.mxu0 0.0
    %178 = vmatpush1.xpose.msra.mxu0 0.0
    %179 = vmatprep.subr.mxu0 0.0
    %180 = vmatpush1.xpose.msra.mxu0 0.0
    %181 = vmatprep.subr.mxu0 0.0
    %182 = vmatpush1.xpose.msra.mxu0 0.0
    %183 = vmatprep.mubr.f32.mxu0 0.0
    %184 = vmatmul.mubr.f32.gmra.mrb[0].mxu0 %v115
    %v185 = vpop.f32.mrb[0].mxu0
    %v186 = vadd.f32 %v110, %v185
    %v187 = vpop.f32.mrb[0].mxu0
    %188 = vdwg.mxu0
    %190 = vrot.lane.b32.xlu0 %v107, 112
    %v191 = vpop.permute.xlu0 %190
    %v192 = vsel %vm114, %v107, 0
    %v194 = vsel %vm114, %v191, 0
    %196 = vmatprep.subr.mxu0 0.0
    %197 = vmatpush1.xpose.msra.mxu0 %v194
    %198 = vmatprep.subr.mxu0 0.0
    %199 = vmatpush1.xpose.msra.mxu0 0.0
    %200 = vmatprep.subr.mxu0 0.0
    %201 = vmatpush1.xpose.msra.mxu0 0.0
    %202 = vmatprep.subr.mxu0 0.0
    %203 = vmatpush1.xpose.msra.mxu0 0.0
    %204 = vmatprep.subr.mxu0 0.0
    %205 = vmatpush1.xpose.msra.mxu0 0.0
    %206 = vmatprep.subr.mxu0 0.0
    %207 = vmatpush1.xpose.msra.mxu0 0.0
    %208 = vmatprep.subr.mxu0 0.0
    %209 = vmatpush1.xpose.msra.mxu0 0.0
    %210 = vmatprep.subr.mxu0 0.0
    %211 = vmatpush1.xpose.msra.mxu0 0.0
    %212 = vmatprep.subr.mxu0 0.0
    %213 = vmatpush1.xpose.msra.mxu0 0.0
    %214 = vmatprep.subr.mxu0 0.0
    %215 = vmatpush1.xpose.msra.mxu0 0.0
    %216 = vmatprep.subr.mxu0 0.0
    %217 = vmatpush1.xpose.msra.mxu0 0.0
    %218 = vmatprep.subr.mxu0 0.0
    %219 = vmatpush1.xpose.msra.mxu0 0.0
    %220 = vmatprep.subr.mxu0 0.0
    %221 = vmatpush1.xpose.msra.mxu0 0.0
    %222 = vmatprep.subr.mxu0 0.0
    %223 = vmatpush1.xpose.msra.mxu0 0.0
    %224 = vmatprep.subr.mxu0 0.0
    %225 = vmatpush1.xpose.msra.mxu0 0.0
    %226 = vmatprep.subr.mxu0 0.0
    %227 = vmatpush1.xpose.msra.mxu0 0.0
    %228 = vmatprep.subr.mxu0 0.0
    %229 = vmatpush1.xpose.msra.mxu0 0.0
    %230 = vmatprep.subr.mxu0 0.0
    %231 = vmatpush1.xpose.msra.mxu0 0.0
    %232 = vmatprep.subr.mxu0 0.0
    %233 = vmatpush1.xpose.msra.mxu0 0.0
    %234 = vmatprep.subr.mxu0 0.0
    %235 = vmatpush1.xpose.msra.mxu0 0.0
    %236 = vmatprep.subr.mxu0 0.0
    %237 = vmatpush1.xpose.msra.mxu0 0.0
    %238 = vmatprep.subr.mxu0 0.0
    %239 = vmatpush1.xpose.msra.mxu0 0.0
    %240 = vmatprep.subr.mxu0 0.0
    %241 = vmatpush1.xpose.msra.mxu0 0.0
    %242 = vmatprep.subr.mxu0 0.0
    %243 = vmatpush1.xpose.msra.mxu0 0.0
    %244 = vmatprep.subr.mxu0 0.0
    %245 = vmatpush1.xpose.msra.mxu0 0.0
    %246 = vmatprep.subr.mxu0 0.0
    %247 = vmatpush1.xpose.msra.mxu0 0.0
    %248 = vmatprep.subr.mxu0 0.0
    %249 = vmatpush1.xpose.msra.mxu0 0.0
    %250 = vmatprep.subr.mxu0 0.0
    %251 = vmatpush1.xpose.msra.mxu0 0.0
    %252 = vmatprep.subr.mxu0 0.0
    %253 = vmatpush1.xpose.msra.mxu0 0.0
    %254 = vmatprep.subr.mxu0 0.0
    %255 = vmatpush1.xpose.msra.mxu0 0.0
    %256 = vmatprep.subr.mxu0 0.0
    %257 = vmatpush1.xpose.msra.mxu0 0.0
    %258 = vmatprep.subr.mxu0 0.0
    %259 = vmatpush1.xpose.msra.mxu0 0.0
    %260 = vmatprep.mubr.f32.mxu0 0.0
    %261 = vmatmul.mubr.f32.gmra.mrb[0].mxu0 %v192
    %v262 = vpop.f32.mrb[0].mxu0
    %v263 = vadd.f32 %v110, %v262
    %v264 = vpop.f32.mrb[0].mxu0
    %265 = vdwg.mxu0
    %v266 = vxor.u32 %v186, 2147483648
    %v267 = vxor.u32 %v263, 2147483648
    %v268 = vmul.f32 %v266, 1.442695
    %v269 = vpow.pop %v268
    %v270 = vmul.f32 %v267, 1.442695
    %v271 = vpow.pop %v270
    %v272 = vadd.f32 %v269, 1.0
    %v273 = vadd.f32 %v271, 1.0
    %v274 = vrcp.pop %v272
    %v275 = vmul.f32 1.0, %v274
    %v276 = vrcp.pop %v273
    %v277 = vmul.f32 1.0, %v276
    %v278 = vld [vmem:[%s3] sm:$0xff]
    %vm279 = vcmask 64512
    %v281 = vsel %vm279, %v278, 0
    %283 = vmatprep.subr.mxu0 0.0
    %284 = vmatpush1.msra.mxu0 %v275
    %285 = vmatprep.subr.mxu0 0.0
    %286 = vmatpush1.msra.mxu0 0.0
    %287 = vmatprep.subr.mxu0 0.0
    %288 = vmatpush1.msra.mxu0 0.0
    %289 = vmatprep.subr.mxu0 0.0
    %290 = vmatpush1.msra.mxu0 0.0
    %291 = vmatprep.subr.mxu0 0.0
    %292 = vmatpush1.msra.mxu0 0.0
    %293 = vmatprep.subr.mxu0 0.0
    %294 = vmatpush1.msra.mxu0 0.0
    %295 = vmatprep.subr.mxu0 0.0
    %296 = vmatpush1.msra.mxu0 0.0
    %297 = vmatprep.subr.mxu0 0.0
    %298 = vmatpush1.msra.mxu0 0.0
    %299 = vmatprep.subr.mxu0 0.0
    %300 = vmatpush1.msra.mxu0 0.0
    %301 = vmatprep.subr.mxu0 0.0
    %302 = vmatpush1.msra.mxu0 0.0
    %303 = vmatprep.subr.mxu0 0.0
    %304 = vmatpush1.msra.mxu0 0.0
    %305 = vmatprep.subr.mxu0 0.0
    %306 = vmatpush1.msra.mxu0 0.0
    %307 = vmatprep.subr.mxu0 0.0
    %308 = vmatpush1.msra.mxu0 0.0
    %309 = vmatprep.subr.mxu0 0.0
    %310 = vmatpush1.msra.mxu0 0.0
    %311 = vmatprep.subr.mxu0 0.0
    %312 = vmatpush1.msra.mxu0 0.0
    %313 = vmatprep.subr.mxu0 0.0
    %314 = vmatpush1.msra.mxu0 0.0
    %315 = vmatprep.subr.mxu0 0.0
    %316 = vmatpush1.msra.mxu0 0.0
    %317 = vmatprep.subr.mxu0 0.0
    %318 = vmatpush1.msra.mxu0 0.0
    %319 = vmatprep.subr.mxu0 0.0
    %320 = vmatpush1.msra.mxu0 0.0
    %321 = vmatprep.subr.mxu0 0.0
    %322 = vmatpush1.msra.mxu0 0.0
    %323 = vmatprep.subr.mxu0 0.0
    %324 = vmatpush1.msra.mxu0 0.0
    %325 = vmatprep.subr.mxu0 0.0
    %326 = vmatpush1.msra.mxu0 0.0
    %327 = vmatprep.subr.mxu0 0.0
    %328 = vmatpush1.msra.mxu0 0.0
    %329 = vmatprep.subr.mxu0 0.0
    %330 = vmatpush1.msra.mxu0 0.0
    %331 = vmatprep.subr.mxu0 0.0
    %332 = vmatpush1.msra.mxu0 0.0
    %333 = vmatprep.subr.mxu0 0.0
    %334 = vmatpush1.msra.mxu0 0.0
    %335 = vmatprep.subr.mxu0 0.0
    %336 = vmatpush1.msra.mxu0 0.0
    %337 = vmatprep.subr.mxu0 0.0
    %338 = vmatpush1.msra.mxu0 0.0
    %339 = vmatprep.subr.mxu0 0.0
    %340 = vmatpush1.msra.mxu0 0.0
    %341 = vmatprep.subr.mxu0 0.0
    %342 = vmatpush1.msra.mxu0 0.0
    %343 = vmatprep.subr.mxu0 0.0
    %344 = vmatpush1.msra.mxu0 0.0
    %345 = vmatprep.subr.mxu0 0.0
    %346 = vmatpush1.msra.mxu0 0.0
    %347 = vmatprep.mubr.f32.mxu0 0.0
    %348 = vmatmul.mubr.f32.gmra.mrb[0].mxu0 %v281
    %v349 = vpop.f32.mrb[0].mxu0
    %v350 = vadd.f32 0.0, %v349
    %v351 = vpop.f32.mrb[0].mxu0
    %352 = vdwg.mxu0
    %353 = vmatprep.subr.mxu0 0.0
    %354 = vmatpush1.msra.mxu0 %v277
    %355 = vmatprep.subr.mxu0 0.0
    %356 = vmatpush1.msra.mxu0 0.0
    %357 = vmatprep.subr.mxu0 0.0
    %358 = vmatpush1.msra.mxu0 0.0
    %359 = vmatprep.subr.mxu0 0.0
    %360 = vmatpush1.msra.mxu0 0.0
    %361 = vmatprep.subr.mxu0 0.0
    %362 = vmatpush1.msra.mxu0 0.0
    %363 = vmatprep.subr.mxu0 0.0
    %364 = vmatpush1.msra.mxu0 0.0
    %365 = vmatprep.subr.mxu0 0.0
    %366 = vmatpush1.msra.mxu0 0.0
    %367 = vmatprep.subr.mxu0 0.0
    %368 = vmatpush1.msra.mxu0 0.0
    %369 = vmatprep.subr.mxu0 0.0
    %370 = vmatpush1.msra.mxu0 0.0
    %371 = vmatprep.subr.mxu0 0.0
    %372 = vmatpush1.msra.mxu0 0.0
    %373 = vmatprep.subr.mxu0 0.0
    %374 = vmatpush1.msra.mxu0 0.0
    %375 = vmatprep.subr.mxu0 0.0
    %376 = vmatpush1.msra.mxu0 0.0
    %377 = vmatprep.subr.mxu0 0.0
    %378 = vmatpush1.msra.mxu0 0.0
    %379 = vmatprep.subr.mxu0 0.0
    %380 = vmatpush1.msra.mxu0 0.0
    %381 = vmatprep.subr.mxu0 0.0
    %382 = vmatpush1.msra.mxu0 0.0
    %383 = vmatprep.subr.mxu0 0.0
    %384 = vmatpush1.msra.mxu0 0.0
    %385 = vmatprep.subr.mxu0 0.0
    %386 = vmatpush1.msra.mxu0 0.0
    %387 = vmatprep.subr.mxu0 0.0
    %388 = vmatpush1.msra.mxu0 0.0
    %389 = vmatprep.subr.mxu0 0.0
    %390 = vmatpush1.msra.mxu0 0.0
    %391 = vmatprep.subr.mxu0 0.0
    %392 = vmatpush1.msra.mxu0 0.0
    %393 = vmatprep.subr.mxu0 0.0
    %394 = vmatpush1.msra.mxu0 0.0
    %395 = vmatprep.subr.mxu0 0.0
    %396 = vmatpush1.msra.mxu0 0.0
    %397 = vmatprep.subr.mxu0 0.0
    %398 = vmatpush1.msra.mxu0 0.0
    %399 = vmatprep.subr.mxu0 0.0
    %400 = vmatpush1.msra.mxu0 0.0
    %401 = vmatprep.subr.mxu0 0.0
    %402 = vmatpush1.msra.mxu0 0.0
    %403 = vmatprep.subr.mxu0 0.0
    %404 = vmatpush1.msra.mxu0 0.0
    %405 = vmatprep.subr.mxu0 0.0
    %406 = vmatpush1.msra.mxu0 0.0
    %407 = vmatprep.subr.mxu0 0.0
    %408 = vmatpush1.msra.mxu0 0.0
    %409 = vmatprep.subr.mxu0 0.0
    %410 = vmatpush1.msra.mxu0 0.0
    %411 = vmatprep.subr.mxu0 0.0
    %412 = vmatpush1.msra.mxu0 0.0
    %413 = vmatprep.subr.mxu0 0.0
    %414 = vmatpush1.msra.mxu0 0.0
    %415 = vmatprep.subr.mxu0 0.0
    %416 = vmatpush1.msra.mxu0 0.0
    %417 = vmatprep.mubr.f32.mxu0 0.0
    %418 = vmatmul.mubr.f32.gmra.mrb[0].mxu0 %v281
    %v419 = vpop.f32.mrb[0].mxu0
    %v420 = vadd.f32 0.0, %v419
    %v421 = vpop.f32.mrb[0].mxu0
    %422 = vdwg.mxu0
    %v423 = vsel %vm279, %v350, -inf
    %v424 = vrot.slane %v423, 4
    %v425 = vmax.f32 %v423, %v424
    %v426 = vrot.slane %v425, 2
    %v427 = vmax.f32 %v425, %v426
    %v428 = vrot.slane %v427, 1
    %v429 = vmax.f32 %v427, %v428
    %v430 = vsel %vm279, %v420, -inf
    %v431 = vrot.slane %v430, 4
    %v432 = vmax.f32 %v430, %v431
    %v433 = vrot.slane %v432, 2
    %v434 = vmax.f32 %v432, %v433
    %v435 = vrot.slane %v434, 1
    %v436 = vmax.f32 %v434, %v435
    %v437 = vsub.f32 %v350, %v429
    %v438 = vsub.f32 %v420, %v436
    %v439 = vmul.f32 %v437, 1.442695
    %v440 = vpow.pop %v439
    %v441 = vmul.f32 %v438, 1.442695
    %v442 = vpow.pop %v441
    %v443 = vsel %vm279, %v440, 0.0
    %v444 = vrot.slane %v443, 4
    %v445 = vadd.f32 %v443, %v444
    %v446 = vrot.slane %v445, 2
    %v447 = vadd.f32 %v445, %v446
    %v448 = vrot.slane %v447, 1
    %v449 = vadd.f32 %v447, %v448
    %v450 = vsel %vm279, %v442, 0.0
    %v451 = vrot.slane %v450, 4
    %v452 = vadd.f32 %v450, %v451
    %v453 = vrot.slane %v452, 2
    %v454 = vadd.f32 %v452, %v453
    %v455 = vrot.slane %v454, 1
    %v456 = vadd.f32 %v454, %v455
    %v457 = vrcp.pop %v449
    %v458 = vmul.f32 %v440, %v457
    %v459 = vrcp.pop %v456
    %v460 = vmul.f32 %v442, %v459
    %461 = vst.msk [vmem:[#allocation2] sm:$0xff] %vm279, %v458
    %462 = vst.msk [vmem:[#allocation2 + $0x8] sm:$0xff] %vm279, %v460
    // Predicated region
    $region18: #{tat_forward.1} parent=1 // pred_check
      _
    $region19: #{tat_forward.1} parent=1 // pred_check_branch
      %464 = sbr.rel (0) target = $region21
    $region20: #{tat_forward.1} parent=1 // pred_region
      %s466 = ssub.s32 256, 256
      %467 = vsyncadd [#allocation3], %s466
      %s468 = sshll.u32 [#allocation2], 4
      %s469 = int_to_ptr.vmem [resolvable:$true] %s468
      %474 = dma.vmem_to_hbm [thread:$0]  %s469, 256, %s4, [#allocation3], 128, 128, 8
    $region21: #{tat_forward.1} parent=1 // pred_fallthru
      _
    // Predicated region
    $region22: #{tat_forward.1} parent=1 // pred_check
      _
    $region23: #{tat_forward.1} parent=1 // pred_check_branch
      %476 = sbr.rel (0) target = $region25
    $region24: #{tat_forward.1} parent=1 // pred_region
      %477 = dma.done [#allocation3], 256
    $region25: #{tat_forward.1} parent=1 // pred_fallthru
      _
    %478 = vsyncpa [#allocation3], 1

</llo_original>
